<compile_context>
chip_gen: v5e
topology: v5e:2x2
jax: 0.10.0
libtpu: 0.0.40
codegen_flags: <defaults>
</compile_context>

<pallas_src>
import jax
import jax.numpy as jnp
import numpy as np
from jax.experimental import pallas as pl
from jax.experimental.pallas import tpu as pltpu


# ----------------------------------------------------------------------------
# One-time probe of pltpu.roll's sign convention (review: "verify once").
# Returns u in {-1, +1} such that  pltpu.roll(x, s, axis)[j] == x[(j + u*s) % n].
# ----------------------------------------------------------------------------
_UNIT_DELTA = None


def _roll_unit_delta():
    global _UNIT_DELTA
    if _UNIT_DELTA is None:
        def kern(x_ref, o_ref):
            o_ref[...] = pltpu.roll(x_ref[...], 1, axis=1)

        probe = jnp.broadcast_to(jnp.arange(128, dtype=jnp.int32), (8, 128))
        out = pl.pallas_call(
            kern, out_shape=jax.ShapeDtypeStruct((8, 128), jnp.int32))(probe)
        v = int(jax.block_until_ready(out)[0, 1])
        if v == 0:                       # jnp.roll convention: out[j] = in[j-1]
            _UNIT_DELTA = -1
        elif v == 2:                     # opposite convention: out[j] = in[j+1]
            _UNIT_DELTA = 1
        else:
            raise RuntimeError(f"unexpected pltpu.roll semantics: out[0,1]={v}")
    return _UNIT_DELTA


# ----------------------------------------------------------------------------
# Kernel
# ----------------------------------------------------------------------------
def _make_minmax_kernel(k, W, unit_delta):
    """Kernel over a (TR, L) block; L is a multiple of k*W (whole bands only)."""
    kW = k * W
    pow2 = (k & (k - 1)) == 0 and (W & (W - 1)) == 0
    log_not_needed = None  # (offsets derived without shifts below)
    del log_not_needed

    def kernel(x_ref, max_ref, min_ref):
        x = x_ref[...]                                    # (TR, L) float32
        TR, L = x.shape

        def s_of(delta):                                  # lane shift bringing partner at +delta
            return (unit_delta * delta) % L

        li = jax.lax.broadcasted_iota(jnp.int32, x.shape, 1)   # lane index
        if pow2:
            b = li & (kW - 1)          # offset inside the k*W band (int32)
            dw = li & (k - 1)          # column offset inside the k x k window
        else:
            lif = li.astype(jnp.float32)
            # exact floor-div trick (no integer vector div/rem)
            b = lif - float(kW) * jnp.floor((lif + 0.5) * (1.0 / kW))
            dw = lif - float(k) * jnp.floor((lif + 0.5) * (1.0 / k))
        # Any injective, row-major-order-preserving position id works for the
        # first-occurrence tie-break; the raw lane index is one.
        p_self = li
        BIG = L                         # sentinel > every valid p_self

        # (shift, validity-mask) pairs.  Masks depend only on the element's own
        # offsets; a lane wrap at the block edge can never pass the mask because
        # a band never straddles a row of the layout.
        lane_steps, row_steps = [], []
        for d in range(1, k):
            lane_steps.append((s_of(+d), dw < (k - d)))          # partner at dw + d
            lane_steps.append((s_of(-d), dw >= d))               # partner at dw - d
            row_steps.append((s_of(+d * W), b < (k - d) * W))    # partner at dh + d
            row_steps.append((s_of(-d * W), b >= d * W))         # partner at dh - d

        # ---- pass A: window max / min (separable all-reduce, lanes only) ----
        rmax, rmin = x, x
        for s, msk in lane_steps:
            xr = pltpu.roll(x, s, axis=1)
            rmax = jnp.maximum(rmax, jnp.where(msk, xr, -jnp.inf))
            rmin = jnp.minimum(rmin, jnp.where(msk, xr, jnp.inf))
        wmax, wmin = rmax, rmin
        for s, msk in row_steps:
            wmax = jnp.maximum(wmax, jnp.where(msk, pltpu.roll(rmax, s, axis=1), -jnp.inf))
            wmin = jnp.minimum(wmin, jnp.where(msk, pltpu.roll(rmin, s, axis=1), jnp.inf))

        # ---- pass B: first-occurrence position of the window max / min ----
        cmax = jnp.where(x == wmax, p_self, BIG)
        cmin = jnp.where(x == wmin, p_self, BIG)
        pmax, pmin = cmax, cmin
        for s, msk in lane_steps:
            pmax = jnp.minimum(pmax, jnp.where(msk, pltpu.roll(cmax, s, axis=1), BIG))
            pmin = jnp.minimum(pmin, jnp.where(msk, pltpu.roll(cmin, s, axis=1), BIG))
        qmax, qmin = pmax, pmin
        for s, msk in row_steps:
            qmax = jnp.minimum(qmax, jnp.where(msk, pltpu.roll(pmax, s, axis=1), BIG))
            qmin = jnp.minimum(qmin, jnp.where(msk, pltpu.roll(pmin, s, axis=1), BIG))

        # ---- unpool scatter: keep x only at the winning window position ----
        max_ref[...] = jnp.where(p_self == qmax, x, 0.0)
        min_ref[...] = jnp.where(p_self == qmin, x, 0.0)

    return kernel


# ----------------------------------------------------------------------------
# Layout / tiling choices
# ----------------------------------------------------------------------------
def _choose_layout(total, k, W):
    """Pick (L, R): lanes per row (multiple of k*W, >=128 if possible) and rows."""
    base = k * W
    nb = total // base                         # number of complete bands
    m_min = max(1, -(-128 // base))            # bands per row so that L >= 128
    if nb <= m_min:
        return total, 1                        # everything fits in one row
    mm = None
    for cand in range(m_min, min(m_min + 64, nb) + 1):
        if nb % cand == 0:                     # zero-padding preferred
            mm = cand
            break
    if mm is None:
        mm = m_min
    L = mm * base
    R = -(-nb // mm)
    return L, R


def _choose_row_tile(R, L, target_bytes=2 * 1024 * 1024):
    """Return (TR, R_pad): rows per block and the padded row count it tiles."""
    if R <= 8:
        return R, R                            # single block
    budget = max(8, (target_bytes // (4 * L)) // 8 * 8)
    denom = 4 if R >= 32 else 2                # keep >=2 (>=4) blocks for megacore
    cap = max(8, (R // denom) // 8 * 8)
    max_tr = min(budget, cap)
    for t in range(max_tr, 7, -8):             # largest divisor => zero padding
        if R % t == 0:
            return t, R
    return max_tr, -(-R // max_tr) * max_tr    # rare fallback: pad rows


# ----------------------------------------------------------------------------
# Public wrapper
# ----------------------------------------------------------------------------
def min_max_layer(x, kernel_size):
    """x: (C, H, W).  Returns (x_max, x_min), each (1, C, H, W) float32."""
    assert x.ndim == 3, "expected (C, H, W)"
    C, H, W = x.shape
    k = int(kernel_size)
    assert H % k == 0 and W % k == 0, "spatial dims must be divisible by kernel_size"

    total = C * H * W
    L, R = _choose_layout(total, k, W)
    TR, R_pad = _choose_row_tile(R, L)

    xf = x.astype(jnp.float32).reshape(-1)              # free, row-major (c, h, w)
    if R_pad * L != total:
        xf = jnp.pad(xf, (0, R_pad * L - total))        # whole zero bands only
    x2 = xf.reshape(R_pad, L)

    spec = pl.BlockSpec((TR, L), lambda i: (i, 0))
    max2, min2 = pl.pallas_call(
        _make_minmax_kernel(k, W, _roll_unit_delta()),
        out_shape=(jax.ShapeDtypeStruct((R_pad, L), jnp.float32),
                   jax.ShapeDtypeStruct((R_pad, L), jnp.float32)),
        grid=(R_pad // TR,),
        in_specs=[spec],
        out_specs=(spec, spec),
        compiler_params=pltpu.CompilerParams(
            dimension_semantics=("parallel",),
            vmem_limit_bytes=32 * 1024 * 1024,
        ),
    )(x2)

    def unflat(y):
        return y.reshape(-1)[:total].reshape(C, H, W)[None]

    return unflat(max2), unflat(min2)


# ----------------------------------------------------------------------------
# Pure numpy reference mirroring the PyTorch module (first-occurrence rule).
# ----------------------------------------------------------------------------
def _reference_numpy(x, k):
    x = np.asarray(x, dtype=np.float32)
    C, H, W = x.shape
    out_max = np.zeros((1, C, H, W), dtype=np.float32)
    out_min = np.zeros((1, C, H, W), dtype=np.float32)
    for c in range(C):
        for hi in range(H // k):
            for wj in range(W // k):
                win = x[c, hi * k:(hi + 1) * k, wj * k:(wj + 1) * k].reshape(-1)
                amax = int(np.argmax(win))        # first occurrence, row-major
                amin = int(np.argmin(win))
                out_max[0, c, hi * k + amax // k, wj * k + amax % k] = win[amax]
                out_min[0, c, hi * k + amin // k, wj * k + amin % k] = win[amin]
    return out_max, out_min


if __name__ == "__main__":
    key = jax.random.PRNGKey(0)
    cases = [
        ("random  k=2 pow2 ", (4, 16, 16), 2, False),
        ("random  k=3 npow2", (3, 12, 12), 3, False),
        ("ties    k=2 tiny ", (2, 8, 8), 2, True),      # many equal values per window
        ("random  k=2 multi", (16, 32, 32), 2, False),  # multi-block grid (grid=4)
    ]
    for name, (C, H, W), k, quantize in cases:
        key, sub = jax.random.split(key)
        x = jax.random.normal(sub, (C, H, W), dtype=jnp.float32)
        if quantize:
            x = jnp.floor(x * 1.5)                       # force ties inside windows

        x_max, x_min = min_max_layer(x, k)
        x_max = jax.block_until_ready(x_max)
        x_min = jax.block_until_ready(x_min)

        ref_max, ref_min = _reference_numpy(np.asarray(x), k)
        np.testing.assert_allclose(np.asarray(x_max), ref_max, rtol=0, atol=0)
        np.testing.assert_allclose(np.asarray(x_min), ref_min, rtol=0, atol=0)
        assert x_max.shape == (1, C, H, W) and x_max.dtype == jnp.float32
        assert x_min.shape == (1, C, H, W) and x_min.dtype == jnp.float32

    print("KERNEL_OK")
</pallas_src>

<mosaic_0001>
module attributes {stable_mosaic.version = 11 : i64} {
  func.func @kern(%arg0: memref<8x128xi32, #tpu.memory_space<vmem>>, %arg1: memref<8x128xi32, #tpu.memory_space<vmem>>) attributes {dimension_semantics = [], scalar_prefetch = 0 : i64, scratch_operands = 0 : i64, tpu.core_type = #tpu.core_type<tc>} {
    %c0 = arith.constant 0 : index
    %c0_0 = arith.constant 0 : index
    %0 = vector.load %arg0[%c0, %c0_0] : memref<8x128xi32, #tpu.memory_space<vmem>>, vector<8x128xi32>
    %c1_i32 = arith.constant 1 : i32
    %1 = tpu.dynamic_rotate %0 by %c1_i32 dim 1 : vector<8x128xi32>, i32 -> vector<8x128xi32>
    %c0_1 = arith.constant 0 : index
    %c0_2 = arith.constant 0 : index
    %2 = vector.load %arg1[%c0_1, %c0_2] : memref<8x128xi32, #tpu.memory_space<vmem>>, vector<8x128xi32>
    tpu.vector_store %arg1[%c0_1, %c0_2], %1 {strides = array<i32>} : memref<8x128xi32, #tpu.memory_space<vmem>>, vector<8x128xi32>,
    return
  }
}

</mosaic_0001>

<llo_original>
// kernel: tpu_custom_call.1
$region0: #{tpu_custom_call.1}
  #allocation0 [shape = 'u32[]', space=smem, size = 0x4, offset = 0x4, fixed_abs, tag = 'smem constant byte address 0x4 - core index']
  #allocation1 [shape = 'u32[72,128]{1,0:T(1,128)}', space=vmem, size = 0x9000, scoped, tag = 'internal scratch']
  %s0 = inlined_call_operand.hbm [shape: s32[8,128], index: 0, kind: input, shape index: {}]
  %s1 = inlined_call_operand.hbm [shape: s32[8,128], index: 1, kind: output, shape index: {}]
  %s2 = sld [smem:[#allocation0]]
  $region18: #{tpu_custom_call.1} parent=0
    _
  %s4 = ssub.s32 1, %s2
  %s5 = scalar_select 0, %s4, %s2
  $region1: #{tpu_custom_call.1} parent=0
    #allocation2 [shape = 'u8[4096]{0}', space=vmem, size = 0x1000, scoped, tag = 'input window, operand 0, single buffered']
    #allocation3 [shape = 's32[1]{0}', space=sflag, size = 0x4, scoped, tag = 'scoped memory for tpu_custom_call.1']
    #allocation4 [shape = 's32[1]{0}', space=sflag, size = 0x4, scoped, tag = 'scoped memory for tpu_custom_call.1']
    #allocation5 [shape = 'u8[4096]{0}', space=vmem, size = 0x1000, scoped, tag = 'output window, operand 0, single buffered']
    %6 = vsyncpa [#allocation3], 0
    %7 = vsyncpa [#allocation4], 0
    // Predicated region
    $region2: #{tpu_custom_call.1} parent=1 // pred_check
      _
    $region3: #{tpu_custom_call.1} parent=1 // pred_check_branch
      %9 = sbr.rel (0) target = $region5
    $region4: #{tpu_custom_call.1} parent=1 // pred_region
      %11 = vsyncadd [#allocation3], 0
      %s13 = sshll.u32 %s0, 4
      %s14 = int_to_ptr.hbm [resolvable:$true] %s13
      %s15 = sshll.u32 [#allocation2], 4
      %s16 = int_to_ptr.vmem [resolvable:$true] %s15
      %18 = dma.hbm_to_vmem [thread:$0]  %s14, 128, %s16, [#allocation3]
    $region5: #{tpu_custom_call.1} parent=1 // pred_fallthru
      _
    // Predicated region
    $region6: #{tpu_custom_call.1} parent=1 // pred_check
      _
    $region7: #{tpu_custom_call.1} parent=1 // pred_check_branch
      %20 = sbr.rel (0) target = $region9
    $region8: #{tpu_custom_call.1} parent=1 // pred_region
      %22 = dma.done [#allocation3], 128
    $region9: #{tpu_custom_call.1} parent=1 // pred_fallthru
      _
    %v23 = vld [vmem:[#allocation2] sm:$0xff]
    %24 = vrot.lane.b32.xlu0 %v23, 1
    %v25 = vpop.permute.xlu0 %24
    %26 = vst [vmem:[#allocation5] sm:$0xff] %v25
    // Predicated region
    $region10: #{tpu_custom_call.1} parent=1 // pred_check
      _
    $region11: #{tpu_custom_call.1} parent=1 // pred_check_branch
      %28 = sbr.rel (0) target = $region13
    $region12: #{tpu_custom_call.1} parent=1 // pred_region
      %30 = vsyncadd [#allocation4], 0
      %s32 = sshll.u32 [#allocation5], 4
      %s33 = int_to_ptr.vmem [resolvable:$true] %s32
      %s34 = sshll.u32 %s1, 4
      %s35 = int_to_ptr.hbm [resolvable:$true] %s34
      %37 = dma.vmem_to_hbm [thread:$0]  %s33, 128, %s35, [#allocation4]
    $region13: #{tpu_custom_call.1} parent=1 // pred_fallthru
      _
    // Predicated region
    $region14: #{tpu_custom_call.1} parent=1 // pred_check
      _
    $region15: #{tpu_custom_call.1} parent=1 // pred_check_branch
      %39 = sbr.rel (0) target = $region17
    $region16: #{tpu_custom_call.1} parent=1 // pred_region
      %41 = dma.done [#allocation4], 128
    $region17: #{tpu_custom_call.1} parent=1 // pred_fallthru
      _
    %42 = vsyncpa [#allocation3], 1
    %43 = vsyncpa [#allocation4], 1

</llo_original>
